<compile_context>
chip_gen: v6e
topology: v6e:2x2x1
jax: 0.10.0
libtpu: 0.0.40
codegen_flags: <defaults>
</compile_context>

<pallas_src>
import functools

import jax
import jax.numpy as jnp
from jax.experimental import pallas as pl
from jax.experimental.pallas import tpu as pltpu


def _round_up(x, m):
    return ((x + m - 1) // m) * m


def _mlp_kernel(s_ref, w1_ref, b1_ref, w2_ref, b2_ref, w3_ref, b3_ref, o_ref):
    # MXU dots take the weight dtype; accumulation is f32; bias-add / ReLU
    # stay in f32 (friendly to v5e's f32-only VPU).
    x = s_ref[...].astype(w1_ref.dtype)

    h1 = jnp.dot(x, w1_ref[...], preferred_element_type=jnp.float32)
    h1 = jnp.maximum(h1 + b1_ref[...], 0.0)

    h2 = jnp.dot(h1.astype(w2_ref.dtype), w2_ref[...],
                 preferred_element_type=jnp.float32)
    h2 = jnp.maximum(h2 + b2_ref[...], 0.0)

    out = jnp.dot(h2.astype(w3_ref.dtype), w3_ref[...],
                  preferred_element_type=jnp.float32)
    out = out + b3_ref[...]

    # Only the real action_dim columns are written back to HBM; the lane
    # padding used for the third matmul never leaves VMEM.
    a = o_ref.shape[1]
    o_ref[...] = out[:, :a].astype(o_ref.dtype)


@functools.partial(jax.jit, static_argnames=("block_m", "mxu_dtype"))
def confidence_function_forward(states, actions, params, *, block_m=2048,
                                mxu_dtype=jnp.bfloat16):
    """Pallas forward pass.  `actions` is accepted but unused, matching the
    reference PyTorch forward (torch.cat([states], dim=-1))."""
    del actions  # unused by the reference module's forward
    w1, b1, w2, b2, w3, b3 = params

    # Accept standard PyTorch Linear bias shape (H,) as well as (1, H).
    def _as_row(b):
        return b.reshape(1, -1) if b.ndim == 1 else b
    b1, b2, b3 = _as_row(b1), _as_row(b2), _as_row(b3)

    out_dtype = states.dtype
    B, S = states.shape
    H1 = w1.shape[1]
    H2 = w2.shape[1]
    A = w3.shape[1]

    # --- Lane-dense MXU N dim for the last matmul (VMEM only, not stored) ---
    A_pad = _round_up(A, 128)
    if A_pad != A:
        w3 = jnp.pad(w3, ((0, 0), (0, A_pad - A)))
        b3 = jnp.pad(b3, ((0, 0), (0, A_pad - A)))

    # --- Reduced-precision MXU inputs (f32 accumulation kept) ---
    if mxu_dtype is not None:
        w1 = w1.astype(mxu_dtype)
        w2 = w2.astype(mxu_dtype)
        w3 = w3.astype(mxu_dtype)
        states = states.astype(mxu_dtype)   # halves the per-tile input DMA
    b1 = b1.astype(jnp.float32)
    b2 = b2.astype(jnp.float32)
    b3 = b3.astype(jnp.float32)

    # --- Batch tiling: grid over rows, weights resident across the grid ---
    if B <= block_m:
        tm = B                                # full dim: always a legal block
    else:
        tm = _round_up(block_m, 8)            # sublane-aligned tile
    grid = (pl.cdiv(B, tm),)

    flops = 2 * B * (S * H1 + H1 * H2 + H2 * A_pad)
    bytes_accessed = (
        states.size * states.dtype.itemsize
        + sum(p.size * p.dtype.itemsize for p in (w1, b1, w2, b2, w3, b3))
        + B * A * jnp.dtype(out_dtype).itemsize
    )

    out = pl.pallas_call(
        _mlp_kernel,
        out_shape=jax.ShapeDtypeStruct((B, A), out_dtype),
        grid=grid,
        in_specs=[
            pl.BlockSpec((tm, S), lambda i: (i, 0)),      # states tile (pipelined)
            pl.BlockSpec((S, H1), lambda i: (0, 0)),      # weights: VMEM-resident
            pl.BlockSpec((1, H1), lambda i: (0, 0)),
            pl.BlockSpec((H1, H2), lambda i: (0, 0)),
            pl.BlockSpec((1, H2), lambda i: (0, 0)),
            pl.BlockSpec((H2, A_pad), lambda i: (0, 0)),
            pl.BlockSpec((1, A_pad), lambda i: (0, 0)),
        ],
        out_specs=pl.BlockSpec((tm, A), lambda i: (i, 0)),
        compiler_params=pltpu.CompilerParams(
            dimension_semantics=("parallel",),
        ),
        cost_estimate=pl.CostEstimate(
            flops=flops, transcendentals=0, bytes_accessed=bytes_accessed),
    )(states, w1, b1, w2, b2, w3, b3)

    return out


def init_params(key, state_dim, action_dim, hidden_units=(256, 256)):
    """Deterministic synthetic parameter init (shapes match nn.Linear layers)."""
    dims = [state_dim, *hidden_units, action_dim]
    params = []
    for i in range(len(dims) - 1):
        key, kw, kb = jax.random.split(key, 3)
        fan_in = dims[i]
        bound = 1.0 / jnp.sqrt(fan_in)
        w = jax.random.uniform(kw, (dims[i], dims[i + 1]), jnp.float32, -bound, bound)
        b = jax.random.uniform(kb, (dims[i + 1],), jnp.float32, -bound, bound)
        params.extend([w, b])
    return params


def reference_forward(states, params):
    w1, b1, w2, b2, w3, b3 = params
    h1 = jnp.maximum(states @ w1 + b1, 0.0)
    h2 = jnp.maximum(h1 @ w2 + b2, 0.0)
    return h2 @ w3 + b3


if __name__ == "__main__":
    key = jax.random.PRNGKey(0)
    B, STATE_DIM, ACTION_DIM = 16, 32, 8
    HIDDEN = (256, 256)

    key, ks, ka = jax.random.split(key, 3)
    states = jax.random.normal(ks, (B, STATE_DIM), jnp.float32)
    actions = jax.random.normal(ka, (B, ACTION_DIM), jnp.float32)  # unused by forward

    params = init_params(key, STATE_DIM, ACTION_DIM, HIDDEN)
    ref = reference_forward(states, params)

    # Default path: bf16 MXU inputs, f32 accumulation, single grid step (B < block_m).
    out_bf16 = confidence_function_forward(states, actions, params)
    out_bf16 = jax.block_until_ready(out_bf16)
    assert out_bf16.shape == (B, ACTION_DIM)
    assert jnp.allclose(out_bf16, ref, atol=5e-2, rtol=5e-2), \
        "Pallas bf16 output mismatch vs reference"

    # Pure-f32 path with block_m=8 so the batch grid has >1 step (exercises the
    # pipelined/parallel grid with resident weights and partial-tile stores).
    out_f32 = confidence_function_forward(states, actions, params,
                                          block_m=8, mxu_dtype=None)
    out_f32 = jax.block_until_ready(out_f32)
    assert out_f32.shape == (B, ACTION_DIM)
    assert jnp.allclose(out_f32, ref, atol=1e-4, rtol=1e-4), \
        "Pallas f32 output mismatch vs reference"

    print("KERNEL_OK")
</pallas_src>

<mosaic_0001>
module attributes {stable_mosaic.version = 11 : i64} {
  func.func @_mlp_kernel(%arg0: i32, %arg1: memref<16x32xbf16, #tpu.memory_space<vmem>>, %arg2: memref<32x256xbf16, #tpu.memory_space<vmem>>, %arg3: memref<1x256xf32, #tpu.memory_space<vmem>>, %arg4: memref<256x256xbf16, #tpu.memory_space<vmem>>, %arg5: memref<1x256xf32, #tpu.memory_space<vmem>>, %arg6: memref<256x128xbf16, #tpu.memory_space<vmem>>, %arg7: memref<1x128xf32, #tpu.memory_space<vmem>>, %arg8: memref<16x8xf32, #tpu.memory_space<vmem>>) attributes {dimension_semantics = [#tpu.dimension_semantics<parallel>], iteration_bounds = array<i64: 1>, scalar_prefetch = 0 : i64, scratch_operands = 0 : i64, tpu.core_type = #tpu.core_type<tc>, window_params = [{transform_indices = @transform_0, window_bounds = array<i64: 16, 32>}, {pipeline_mode = #tpu.pipeline_mode<synchronous>, transform_indices = @transform_1, window_bounds = array<i64: 32, 256>}, {pipeline_mode = #tpu.pipeline_mode<synchronous>, transform_indices = @transform_2, window_bounds = array<i64: 1, 256>}, {pipeline_mode = #tpu.pipeline_mode<synchronous>, transform_indices = @transform_3, window_bounds = array<i64: 256, 256>}, {pipeline_mode = #tpu.pipeline_mode<synchronous>, transform_indices = @transform_4, window_bounds = array<i64: 1, 256>}, {pipeline_mode = #tpu.pipeline_mode<synchronous>, transform_indices = @transform_5, window_bounds = array<i64: 256, 128>}, {pipeline_mode = #tpu.pipeline_mode<synchronous>, transform_indices = @transform_6, window_bounds = array<i64: 1, 128>}, {transform_indices = @transform_7, window_bounds = array<i64: 16, 8>}]} {
    %c0 = arith.constant 0 : index
    %c0_0 = arith.constant 0 : index
    %0 = vector.load %arg1[%c0, %c0_0] : memref<16x32xbf16, #tpu.memory_space<vmem>>, vector<16x32xbf16>
    %c0_1 = arith.constant 0 : index
    %c0_2 = arith.constant 0 : index
    %1 = vector.load %arg2[%c0_1, %c0_2] : memref<32x256xbf16, #tpu.memory_space<vmem>>, vector<32x256xbf16>
    %cst = arith.constant dense<0.000000e+00> : vector<16x256xf32>
    %2 = tpu.matmul %0, %1, %cst {dimension_numbers = #tpu.dot_dimension_numbers<[1], [0], [0], [1], [0, 0, 1, 1], [], []>} : vector<16x32xbf16>, vector<32x256xbf16>, vector<16x256xf32> -> vector<16x256xf32>
    %c0_3 = arith.constant 0 : index
    %c0_4 = arith.constant 0 : index
    %3 = vector.load %arg3[%c0_3, %c0_4] : memref<1x256xf32, #tpu.memory_space<vmem>>, vector<1x256xf32>
    %4 = vector.broadcast %3 : vector<1x256xf32> to vector<16x256xf32>
    %5 = arith.addf %2, %4 : vector<16x256xf32>
    %cst_5 = arith.constant 0.000000e+00 : f32
    %6 = vector.broadcast %cst_5 : f32 to vector<16x256xf32>
    %7 = arith.maximumf %5, %6 : vector<16x256xf32>
    %8 = arith.truncf %7 : vector<16x256xf32> to vector<16x256xbf16>
    %c0_6 = arith.constant 0 : index
    %c0_7 = arith.constant 0 : index
    %9 = vector.load %arg4[%c0_6, %c0_7] : memref<256x256xbf16, #tpu.memory_space<vmem>>, vector<256x256xbf16>
    %cst_8 = arith.constant dense<0.000000e+00> : vector<16x256xf32>
    %10 = tpu.matmul %8, %9, %cst_8 {dimension_numbers = #tpu.dot_dimension_numbers<[1], [0], [0], [1], [0, 0, 1, 1], [], []>} : vector<16x256xbf16>, vector<256x256xbf16>, vector<16x256xf32> -> vector<16x256xf32>
    %c0_9 = arith.constant 0 : index
    %c0_10 = arith.constant 0 : index
    %11 = vector.load %arg5[%c0_9, %c0_10] : memref<1x256xf32, #tpu.memory_space<vmem>>, vector<1x256xf32>
    %12 = vector.broadcast %11 : vector<1x256xf32> to vector<16x256xf32>
    %13 = arith.addf %10, %12 : vector<16x256xf32>
    %cst_11 = arith.constant 0.000000e+00 : f32
    %14 = vector.broadcast %cst_11 : f32 to vector<16x256xf32>
    %15 = arith.maximumf %13, %14 : vector<16x256xf32>
    %16 = arith.truncf %15 : vector<16x256xf32> to vector<16x256xbf16>
    %c0_12 = arith.constant 0 : index
    %c0_13 = arith.constant 0 : index
    %17 = vector.load %arg6[%c0_12, %c0_13] : memref<256x128xbf16, #tpu.memory_space<vmem>>, vector<256x128xbf16>
    %cst_14 = arith.constant dense<0.000000e+00> : vector<16x128xf32>
    %18 = tpu.matmul %16, %17, %cst_14 {dimension_numbers = #tpu.dot_dimension_numbers<[1], [0], [0], [1], [0, 0, 1, 1], [], []>} : vector<16x256xbf16>, vector<256x128xbf16>, vector<16x128xf32> -> vector<16x128xf32>
    %c0_15 = arith.constant 0 : index
    %c0_16 = arith.constant 0 : index
    %19 = vector.load %arg7[%c0_15, %c0_16] : memref<1x128xf32, #tpu.memory_space<vmem>>, vector<1x128xf32>
    %20 = vector.broadcast %19 : vector<1x128xf32> to vector<16x128xf32>
    %21 = arith.addf %18, %20 : vector<16x128xf32>
    %22 = vector.extract_strided_slice %21 {offsets = [0, 0], sizes = [16, 8], strides = [1, 1]} : vector<16x128xf32> to vector<16x8xf32>
    %c0_17 = arith.constant 0 : index
    %c0_18 = arith.constant 0 : index
    %23 = vector.load %arg8[%c0_17, %c0_18] : memref<16x8xf32, #tpu.memory_space<vmem>>, vector<16x8xf32>
    tpu.vector_store %arg8[%c0_17, %c0_18], %22 {strides = array<i32>} : memref<16x8xf32, #tpu.memory_space<vmem>>, vector<16x8xf32>,
    return
  }
  func.func @transform_0(%arg0: i32) -> (i32, i32) {
    %c0_i32 = arith.constant 0 : i32
    %c0_i32_0 = arith.constant 0 : i32
    return %arg0, %c0_i32 : i32, i32
  }
  func.func @transform_1(%arg0: i32) -> (i32, i32) {
    %c0_i32 = arith.constant 0 : i32
    %c0_i32_0 = arith.constant 0 : i32
    %c0_i32_1 = arith.constant 0 : i32
    return %c0_i32, %c0_i32_0 : i32, i32
  }
  func.func @transform_2(%arg0: i32) -> (i32, i32) {
    %c0_i32 = arith.constant 0 : i32
    %c0_i32_0 = arith.constant 0 : i32
    %c0_i32_1 = arith.constant 0 : i32
    return %c0_i32, %c0_i32_0 : i32, i32
  }
  func.func @transform_3(%arg0: i32) -> (i32, i32) {
    %c0_i32 = arith.constant 0 : i32
    %c0_i32_0 = arith.constant 0 : i32
    %c0_i32_1 = arith.constant 0 : i32
    return %c0_i32, %c0_i32_0 : i32, i32
  }
  func.func @transform_4(%arg0: i32) -> (i32, i32) {
    %c0_i32 = arith.constant 0 : i32
    %c0_i32_0 = arith.constant 0 : i32
    %c0_i32_1 = arith.constant 0 : i32
    return %c0_i32, %c0_i32_0 : i32, i32
  }
  func.func @transform_5(%arg0: i32) -> (i32, i32) {
    %c0_i32 = arith.constant 0 : i32
    %c0_i32_0 = arith.constant 0 : i32
    %c0_i32_1 = arith.constant 0 : i32
    return %c0_i32, %c0_i32_0 : i32, i32
  }
  func.func @transform_6(%arg0: i32) -> (i32, i32) {
    %c0_i32 = arith.constant 0 : i32
    %c0_i32_0 = arith.constant 0 : i32
    %c0_i32_1 = arith.constant 0 : i32
    return %c0_i32, %c0_i32_0 : i32, i32
  }
  func.func @transform_7(%arg0: i32) -> (i32, i32) {
    %c0_i32 = arith.constant 0 : i32
    %c0_i32_0 = arith.constant 0 : i32
    return %arg0, %c0_i32 : i32, i32
  }
}

</mosaic_0001>

<llo_original>
// kernel: confidence_function_forward.1
$region0: #{confidence_function_forward.1}
  #allocation0 [shape = 'u32[]', space=smem, size = 0x4, offset = 0x4, fixed_abs, tag = 'smem constant byte address 0x4 - core index']
  #allocation1 [shape = 'u32[144,128]{1,0:T(1,128)}', space=vmem, size = 0x12000, scoped, tag = 'internal scratch']
  %s0 = inlined_call_operand.vmem [shape: bf16[16,32], index: 0, kind: input, shape index: {}]
  %s1 = inlined_call_operand.vmem [shape: bf16[32,256], index: 1, kind: input, shape index: {}]
  %s2 = inlined_call_operand.vmem [shape: f32[1,256], index: 2, kind: input, shape index: {}]
  %s3 = inlined_call_operand.vmem [shape: bf16[256,256], index: 3, kind: input, shape index: {}]
  %s4 = inlined_call_operand.vmem [shape: f32[1,256], index: 4, kind: input, shape index: {}]
  %s5 = inlined_call_operand.vmem [shape: bf16[256,128], index: 5, kind: input, shape index: {}]
  %s6 = inlined_call_operand.vmem [shape: f32[1,128], index: 6, kind: input, shape index: {}]
  %s7 = inlined_call_operand.vmem [shape: f32[16,8], index: 7, kind: output, shape index: {}]
  %s8 = sld [smem:[#allocation0]]
  $region38: #{confidence_function_forward.1} parent=0
    _
  %s10 = ssub.s32 1, %s8
  %s11 = scalar_select 0, %s10, %s8
  // Predicated region
  $region2: #{confidence_function_forward.1} parent=0 // pred_check
    _
  $region3: #{confidence_function_forward.1} parent=0 // pred_check_branch
    %13 = sbr.rel (0) target = $region5
  $region4: #{confidence_function_forward.1} parent=0 // pred_region
    _
  $region5: #{confidence_function_forward.1} parent=0 // pred_fallthru
    _
  // Predicated region
  $region6: #{confidence_function_forward.1} parent=0 // pred_check
    _
  $region7: #{confidence_function_forward.1} parent=0 // pred_check_branch
    %15 = sbr.rel (0) target = $region9
  $region8: #{confidence_function_forward.1} parent=0 // pred_region
    _
  $region9: #{confidence_function_forward.1} parent=0 // pred_fallthru
    _
  // Predicated region
  $region10: #{confidence_function_forward.1} parent=0 // pred_check
    _
  $region11: #{confidence_function_forward.1} parent=0 // pred_check_branch
    %17 = sbr.rel (0) target = $region13
  $region12: #{confidence_function_forward.1} parent=0 // pred_region
    _
  $region13: #{confidence_function_forward.1} parent=0 // pred_fallthru
    _
  // Predicated region
  $region14: #{confidence_function_forward.1} parent=0 // pred_check
    _
  $region15: #{confidence_function_forward.1} parent=0 // pred_check_branch
    %19 = sbr.rel (0) target = $region17
  $region16: #{confidence_function_forward.1} parent=0 // pred_region
    _
  $region17: #{confidence_function_forward.1} parent=0 // pred_fallthru
    _
  // Predicated region
  $region18: #{confidence_function_forward.1} parent=0 // pred_check
    _
  $region19: #{confidence_function_forward.1} parent=0 // pred_check_branch
    %21 = sbr.rel (0) target = $region21
  $region20: #{confidence_function_forward.1} parent=0 // pred_region
    _
  $region21: #{confidence_function_forward.1} parent=0 // pred_fallthru
    _
  // Predicated region
  $region22: #{confidence_function_forward.1} parent=0 // pred_check
    _
  $region23: #{confidence_function_forward.1} parent=0 // pred_check_branch
    %23 = sbr.rel (0) target = $region25
  $region24: #{confidence_function_forward.1} parent=0 // pred_region
    _
  $region25: #{confidence_function_forward.1} parent=0 // pred_fallthru
    _
  // Predicated region
  $region26: #{confidence_function_forward.1} parent=0 // pred_check
    _
  $region27: #{confidence_function_forward.1} parent=0 // pred_check_branch
    %25 = sbr.rel (0) target = $region29
  $region28: #{confidence_function_forward.1} parent=0 // pred_region
    _
  $region29: #{confidence_function_forward.1} parent=0 // pred_fallthru
    _
  %v27 = vld [vmem:[%s0] sm:$0xf]
  %v28 = vld [vmem:[%s0 + $0x4] sm:$0xf]
  %v29 = vld [vmem:[%s1] sm:$0xff]
  %v30 = vld [vmem:[%s1 + $0x8] sm:$0xff]
  %v31 = vld [vmem:[%s1 + $0x10] sm:$0xff]
  %v32 = vld [vmem:[%s1 + $0x18] sm:$0xff]
  %v33 = vld [vmem:[%s2] sm:$0x3]
  %v35 = vlaneseq
  %v36 = vshrl.u32 %v35, 7
  %v37 = vsub.s32 0, %v36
  %v38 = vrot.slane %v33, %v37
  %v39 = vlaneseq
  %v40 = vshrl.u32 %v39, 7
  %v41 = vsub.s32 1, %v40
  %v42 = vrot.slane %v33, %v41
  %v47 = vunpack.c.l.b16 %v27
  %v48 = vunpack.c.l.b16 %v28
  %v49 = vpack.c.b16 %v48, %v47
  %v54 = vunpack.c.l.b16 %v29
  %v55 = vunpack.c.h.b16 %v29
  %v56 = vunpack.c.l.b16 %v30
  %v57 = vunpack.c.h.b16 %v30
  %v58 = vunpack.c.l.b16 %v31
  %v59 = vunpack.c.h.b16 %v31
  %v60 = vunpack.c.l.b16 %v32
  %v61 = vunpack.c.h.b16 %v32
  %v62 = vpack.c.b16 %v56, %v54
  %v63 = vpack.c.b16 %v57, %v55
  %v64 = vpack.c.b16 %v60, %v58
  %v65 = vpack.c.b16 %v61, %v59
  %vm70 = vcmask 261120
  %v72 = vsel %vm70, %v49, 0
  %74 = vmatprep.subr.bf16.mxu0 0
  %75 = vmatpush1.bf16.msra.mxu0 0
  %76 = vmatprep.subr.bf16.mxu0 0
  %77 = vmatpush1.bf16.msra.mxu0 0
  %78 = vmatprep.subr.bf16.mxu0 0
  %79 = vmatpush1.bf16.msra.mxu0 0
  %80 = vmatprep.subr.bf16.mxu0 0
  %81 = vmatpush1.bf16.msra.mxu0 0
  %82 = vmatprep.subr.bf16.mxu0 0
  %83 = vmatpush1.bf16.msra.mxu0 0
  %84 = vmatprep.subr.bf16.mxu0 0
  %85 = vmatpush1.bf16.msra.mxu0 0
  %86 = vmatprep.subr.bf16.mxu0 %v65
  %87 = vmatpush1.bf16.msra.mxu0 %v64
  %88 = vmatprep.subr.bf16.mxu0 %v63
  %89 = vmatpush1.bf16.msra.mxu0 %v62
  %90 = vmatprep.subr.bf16.mxu0 0
  %91 = vmatpush2.bf16.msra.mxu0 0
  %92 = vmatprep.subr.bf16.mxu0 0
  %93 = vmatpush2.bf16.msra.mxu0 0
  %94 = vmatprep.subr.bf16.mxu0 0
  %95 = vmatpush2.bf16.msra.mxu0 0
  %96 = vmatprep.subr.bf16.mxu0 0
  %97 = vmatpush2.bf16.msra.mxu0 0
  %98 = vmatprep.subr.bf16.mxu0 0
  %99 = vmatpush2.bf16.msra.mxu0 0
  %100 = vmatprep.subr.bf16.mxu0 0
  %101 = vmatpush2.bf16.msra.mxu0 0
  %102 = vmatprep.subr.bf16.mxu0 0
  %103 = vmatpush2.bf16.msra.mxu0 0
  %104 = vmatprep.subr.bf16.mxu0 0
  %105 = vmatpush2.bf16.msra.mxu0 0
  %106 = vmatprep.mubr.bf16.mxu0 0
  %107 = vmatmul.mubr.bf16.gmra.mxu0 %v72
  %v108 = vpop.f32.mrf.mxu0
  %v109 = vadd.f32 %v38, %v108
  %v110 = vpop.f32.mrf.mxu0
  %v111 = vadd.f32 %v42, %v110
  %v112 = vpop.f32.mrf.mxu0
  %v113 = vadd.f32 %v38, %v112
  %v114 = vpop.f32.mrf.mxu0
  %v115 = vadd.f32 %v42, %v114
  %116 = vdwg.mxu0
  %v117 = vmax.f32 %v109, 0.0
  %v118 = vmax.f32 %v111, 0.0
  %v119 = vmax.f32 %v113, 0.0
  %v120 = vmax.f32 %v115, 0.0
  %v121 = vpack.c.bf16 %v119, %v117
  %v122 = vpack.c.bf16 %v120, %v118
  %v123 = vld [vmem:[%s3] sm:$0xff]
  %v124 = vld [vmem:[%s3 + $0x8] sm:$0xff]
  %v125 = vld [vmem:[%s3 + $0x10] sm:$0xff]
  %v126 = vld [vmem:[%s3 + $0x18] sm:$0xff]
  %v127 = vld [vmem:[%s3 + $0x20] sm:$0xff]
  %v128 = vld [vmem:[%s3 + $0x28] sm:$0xff]
  %v129 = vld [vmem:[%s3 + $0x30] sm:$0xff]
  %v130 = vld [vmem:[%s3 + $0x38] sm:$0xff]
  %v131 = vld [vmem:[%s3 + $0x40] sm:$0xff]
  %v132 = vld [vmem:[%s3 + $0x48] sm:$0xff]
  %v133 = vld [vmem:[%s3 + $0x50] sm:$0xff]
  %v134 = vld [vmem:[%s3 + $0x58] sm:$0xff]
  %v135 = vld [vmem:[%s3 + $0x60] sm:$0xff]
  %v136 = vld [vmem:[%s3 + $0x68] sm:$0xff]
  %v137 = vld [vmem:[%s3 + $0x70] sm:$0xff]
  %v138 = vld [vmem:[%s3 + $0x78] sm:$0xff]
  %v139 = vld [vmem:[%s3 + $0x80] sm:$0xff]
  %v140 = vld [vmem:[%s3 + $0x88] sm:$0xff]
  %v141 = vld [vmem:[%s3 + $0x90] sm:$0xff]
  %v142 = vld [vmem:[%s3 + $0x98] sm:$0xff]
  %v143 = vld [vmem:[%s3 + $0xa0] sm:$0xff]
  %v144 = vld [vmem:[%s3 + $0xa8] sm:$0xff]
  %v145 = vld [vmem:[%s3 + $0xb0] sm:$0xff]
  %v146 = vld [vmem:[%s3 + $0xb8] sm:$0xff]
  %v147 = vld [vmem:[%s3 + $0xc0] sm:$0xff]
  %v148 = vld [vmem:[%s3 + $0xc8] sm:$0xff]
  %v149 = vld [vmem:[%s3 + $0xd0] sm:$0xff]
  %v150 = vld [vmem:[%s3 + $0xd8] sm:$0xff]
  %v151 = vld [vmem:[%s3 + $0xe0] sm:$0xff]
  %v152 = vld [vmem:[%s3 + $0xe8] sm:$0xff]
  %v153 = vld [vmem:[%s3 + $0xf0] sm:$0xff]
  %v154 = vld [vmem:[%s3 + $0xf8] sm:$0xff]
  %v155 = vld [vmem:[%s4] sm:$0x3]
  %v157 = vlaneseq
  %v158 = vshrl.u32 %v157, 7
  %v159 = vsub.s32 0, %v158
  %v160 = vrot.slane %v155, %v159
  %v161 = vlaneseq
  %v162 = vshrl.u32 %v161, 7
  %v163 = vsub.s32 1, %v162
  %v164 = vrot.slane %v155, %v163
  %v199 = vunpack.c.l.b16 %v123
  %v200 = vunpack.c.h.b16 %v123
  %v201 = vunpack.c.l.b16 %v124
  %v202 = vunpack.c.h.b16 %v124
  %v203 = vunpack.c.l.b16 %v125
  %v204 = vunpack.c.h.b16 %v125
  %v205 = vunpack.c.l.b16 %v126
  %v206 = vunpack.c.h.b16 %v126
  %v207 = vunpack.c.l.b16 %v127
  %v208 = vunpack.c.h.b16 %v127
  %v209 = vunpack.c.l.b16 %v128
  %v210 = vunpack.c.h.b16 %v128
  %v211 = vunpack.c.l.b16 %v129
  %v212 = vunpack.c.h.b16 %v129
  %v213 = vunpack.c.l.b16 %v130
  %v214 = vunpack.c.h.b16 %v130
  %v215 = vunpack.c.l.b16 %v131
  %v216 = vunpack.c.h.b16 %v131
  %v217 = vunpack.c.l.b16 %v132
  %v218 = vunpack.c.h.b16 %v132
  %v219 = vunpack.c.l.b16 %v133
  %v220 = vunpack.c.h.b16 %v133
  %v221 = vunpack.c.l.b16 %v134
  %v222 = vunpack.c.h.b16 %v134
  %v223 = vunpack.c.l.b16 %v135
  %v224 = vunpack.c.h.b16 %v135
  %v225 = vunpack.c.l.b16 %v136
  %v226 = vunpack.c.h.b16 %v136
  %v227 = vunpack.c.l.b16 %v137
  %v228 = vunpack.c.h.b16 %v137
  %v229 = vunpack.c.l.b16 %v138
  %v230 = vunpack.c.h.b16 %v138
  %v231 = vunpack.c.l.b16 %v139
  %v232 = vunpack.c.h.b16 %v139
  %v233 = vunpack.c.l.b16 %v140
  %v234 = vunpack.c.h.b16 %v140
  %v235 = vunpack.c.l.b16 %v141
  %v236 = vunpack.c.h.b16 %v141
  %v237 = vunpack.c.l.b16 %v142
  %v238 = vunpack.c.h.b16 %v142
  %v239 = vunpack.c.l.b16 %v143
  %v240 = vunpack.c.h.b16 %v143
  %v241 = vunpack.c.l.b16 %v144
  %v242 = vunpack.c.h.b16 %v144
  %v243 = vunpack.c.l.b16 %v145
  %v244 = vunpack.c.h.b16 %v145
  %v245 = vunpack.c.l.b16 %v146
  %v246 = vunpack.c.h.b16 %v146
  %v247 = vunpack.c.l.b16 %v147
  %v248 = vunpack.c.h.b16 %v147
  %v249 = vunpack.c.l.b16 %v148
  %v250 = vunpack.c.h.b16 %v148
  %v251 = vunpack.c.l.b16 %v149
  %v252 = vunpack.c.h.b16 %v149
  %v253 = vunpack.c.l.b16 %v150
  %v254 = vunpack.c.h.b16 %v150
  %v255 = vunpack.c.l.b16 %v151
  %v256 = vunpack.c.h.b16 %v151
  %v257 = vunpack.c.l.b16 %v152
  %v258 = vunpack.c.h.b16 %v152
  %v259 = vunpack.c.l.b16 %v153
  %v260 = vunpack.c.h.b16 %v153
  %v261 = vunpack.c.l.b16 %v154
  %v262 = vunpack.c.h.b16 %v154
  %v263 = vpack.c.b16 %v201, %v199
  %v264 = vpack.c.b16 %v202, %v200
  %v265 = vpack.c.b16 %v205, %v203
  %v266 = vpack.c.b16 %v206, %v204
  %v267 = vpack.c.b16 %v209, %v207
  %v268 = vpack.c.b16 %v210, %v208
  %v269 = vpack.c.b16 %v213, %v211
  %v270 = vpack.c.b16 %v214, %v212
  %v271 = vpack.c.b16 %v217, %v215
  %v272 = vpack.c.b16 %v218, %v216
  %v273 = vpack.c.b16 %v221, %v219
  %v274 = vpack.c.b16 %v222, %v220
  %v275 = vpack.c.b16 %v225, %v223
  %v276 = vpack.c.b16 %v226, %v224
  %v277 = vpack.c.b16 %v229, %v227
  %v278 = vpack.c.b16 %v230, %v228
  %v279 = vpack.c.b16 %v233, %v231
  %v280 = vpack.c.b16 %v234, %v232
  %v281 = vpack.c.b16 %v237, %v235
  %v282 = vpack.c.b16 %v238, %v236
  %v283 = vpack.c.b16 %v241, %v239
  %v284 = vpack.c.b16 %v242, %v240
  %v285 = vpack.c.b16 %v245, %v243
  %v286 = vpack.c.b16 %v246, %v244
  %v287 = vpack.c.b16 %v249, %v247
  %v288 = vpack.c.b16 %v250, %v248
  %v289 = vpack.c.b16 %v253, %v251
  %v290 = vpack.c.b16 %v254, %v252
  %v291 = vpack.c.b16 %v257, %v255
  %v292 = vpack.c.b16 %v258, %v256
  %v293 = vpack.c.b16 %v261, %v259
  %v294 = vpack.c.b16 %v262, %v260
  %327 = vmatprep.subr.bf16.mxu0 %v278
  %328 = vmatpush1.bf16.msra.mxu0 %v277
  %329 = vmatprep.subr.bf16.mxu0 %v276
  %330 = vmatpush1.bf16.msra.mxu0 %v275
  %331 = vmatprep.subr.bf16.mxu0 %v274
  %332 = vmatpush1.bf16.msra.mxu0 %v273
  %333 = vmatprep.subr.bf16.mxu0 %v272
  %334 = vmatpush1.bf16.msra.mxu0 %v271
  %335 = vmatprep.subr.bf16.mxu0 %v270
  %336 = vmatpush1.bf16.msra.mxu0 %v269
  %337 = vmatprep.subr.bf16.mxu0 %v268
  %338 = vmatpush1.bf16.msra.mxu0 %v267
  %339 = vmatprep.subr.bf16.mxu0 %v266
  %340 = vmatpush1.bf16.msra.mxu0 %v265
  %341 = vmatprep.subr.bf16.mxu0 %v264
  %342 = vmatpush1.bf16.msra.mxu0 %v263
  %343 = vmatprep.subr.bf16.mxu0 %v294
  %344 = vmatpush2.bf16.msra.mxu0 %v293
  %345 = vmatprep.subr.bf16.mxu0 %v292
  %346 = vmatpush2.bf16.msra.mxu0 %v291
  %347 = vmatprep.subr.bf16.mxu0 %v290
  %348 = vmatpush2.bf16.msra.mxu0 %v289
  %349 = vmatprep.subr.bf16.mxu0 %v288
  %350 = vmatpush2.bf16.msra.mxu0 %v287
  %351 = vmatprep.subr.bf16.mxu0 %v286
  %352 = vmatpush2.bf16.msra.mxu0 %v285
  %353 = vmatprep.subr.bf16.mxu0 %v284
  %354 = vmatpush2.bf16.msra.mxu0 %v283
  %355 = vmatprep.subr.bf16.mxu0 %v282
  %356 = vmatpush2.bf16.msra.mxu0 %v281
  %357 = vmatprep.subr.bf16.mxu0 %v280
  %358 = vmatpush2.bf16.msra.mxu0 %v279
  %359 = vmatprep.mubr.bf16.mxu0 %v122
  %360 = vmatmul.mubr.bf16.gmra.mxu0 %v121
  %v361 = vpop.f32.mrf.mxu0
  %v362 = vadd.f32 %v160, %v361
  %v363 = vpop.f32.mrf.mxu0
  %v364 = vadd.f32 %v164, %v363
  %v365 = vpop.f32.mrf.mxu0
  %v366 = vadd.f32 %v160, %v365
  %v367 = vpop.f32.mrf.mxu0
  %v368 = vadd.f32 %v164, %v367
  %369 = vdwg.mxu0
  %v370 = vmax.f32 %v362, 0.0
  %v371 = vmax.f32 %v364, 0.0
  %v372 = vmax.f32 %v366, 0.0
  %v373 = vmax.f32 %v368, 0.0
  %v374 = vpack.c.bf16 %v372, %v370
  %v375 = vpack.c.bf16 %v373, %v371
  %v376 = vld [vmem:[%s5] sm:$0xf]
  %v377 = vld [vmem:[%s5 + $0x4] sm:$0xf]
  %v378 = vld [vmem:[%s5 + $0x8] sm:$0xf]
  %v379 = vld [vmem:[%s5 + $0xc] sm:$0xf]
  %v380 = vld [vmem:[%s5 + $0x10] sm:$0xf]
  %v381 = vld [vmem:[%s5 + $0x14] sm:$0xf]
  %v382 = vld [vmem:[%s5 + $0x18] sm:$0xf]
  %v383 = vld [vmem:[%s5 + $0x1c] sm:$0xf]
  %v384 = vld [vmem:[%s5 + $0x20] sm:$0xf]
  %v385 = vld [vmem:[%s5 + $0x24] sm:$0xf]
  %v386 = vld [vmem:[%s5 + $0x28] sm:$0xf]
  %v387 = vld [vmem:[%s5 + $0x2c] sm:$0xf]
  %v388 = vld [vmem:[%s5 + $0x30] sm:$0xf]
  %v389 = vld [vmem:[%s5 + $0x34] sm:$0xf]
  %v390 = vld [vmem:[%s5 + $0x38] sm:$0xf]
  %v391 = vld [vmem:[%s5 + $0x3c] sm:$0xf]
  %v392 = vld [vmem:[%s5 + $0x40] sm:$0xf]
  %v393 = vld [vmem:[%s5 + $0x44] sm:$0xf]
  %v394 = vld [vmem:[%s5 + $0x48] sm:$0xf]
  %v395 = vld [vmem:[%s5 + $0x4c] sm:$0xf]
  %v396 = vld [vmem:[%s5 + $0x50] sm:$0xf]
  %v397 = vld [vmem:[%s5 + $0x54] sm:$0xf]
  %v398 = vld [vmem:[%s5 + $0x58] sm:$0xf]
  %v399 = vld [vmem:[%s5 + $0x5c] sm:$0xf]
  %v400 = vld [vmem:[%s5 + $0x60] sm:$0xf]
  %v401 = vld [vmem:[%s5 + $0x64] sm:$0xf]
  %v402 = vld [vmem:[%s5 + $0x68] sm:$0xf]
  %v403 = vld [vmem:[%s5 + $0x6c] sm:$0xf]
  %v404 = vld [vmem:[%s5 + $0x70] sm:$0xf]
  %v405 = vld [vmem:[%s5 + $0x74] sm:$0xf]
  %v406 = vld [vmem:[%s5 + $0x78] sm:$0xf]
  %v407 = vld [vmem:[%s5 + $0x7c] sm:$0xf]
  %v408 = vld [vmem:[%s6] sm:$0x1]
  %v410 = vlaneseq
  %v411 = vshrl.u32 %v410, 7
  %v412 = vsub.s32 0, %v411
  %v413 = vrot.slane %v408, %v412
  %v447 = vunpack.c.l.b16 %v376
  %v448 = vunpack.c.l.b16 %v377
  %v449 = vunpack.c.l.b16 %v378
  %v450 = vunpack.c.l.b16 %v379
  %v451 = vunpack.c.l.b16 %v380
  %v452 = vunpack.c.l.b16 %v381
  %v453 = vunpack.c.l.b16 %v382
  %v454 = vunpack.c.l.b16 %v383
  %v455 = vunpack.c.l.b16 %v384
  %v456 = vunpack.c.l.b16 %v385
  %v457 = vunpack.c.l.b16 %v386
  %v458 = vunpack.c.l.b16 %v387
  %v459 = vunpack.c.l.b16 %v388
  %v460 = vunpack.c.l.b16 %v389
  %v461 = vunpack.c.l.b16 %v390
  %v462 = vunpack.c.l.b16 %v391
  %v463 = vunpack.c.l.b16 %v392
  %v464 = vunpack.c.l.b16 %v393
  %v465 = vunpack.c.l.b16 %v394
  %v466 = vunpack.c.l.b16 %v395
  %v467 = vunpack.c.l.b16 %v396
  %v468 = vunpack.c.l.b16 %v397
  %v469 = vunpack.c.l.b16 %v398
  %v470 = vunpack.c.l.b16 %v399
  %v471 = vunpack.c.l.b16 %v400
  %v472 = vunpack.c.l.b16 %v401
  %v473 = vunpack.c.l.b16 %v402
  %v474 = vunpack.c.l.b16 %v403
  %v475 = vunpack.c.l.b16 %v404
  %v476 = vunpack.c.l.b16 %v405
  %v477 = vunpack.c.l.b16 %v406
  %v478 = vunpack.c.l.b16 %v407
  %v479 = vpack.c.b16 %v448, %v447
  %v480 = vpack.c.b16 %v450, %v449
  %v481 = vpack.c.b16 %v452, %v451
  %v482 = vpack.c.b16 %v454, %v453
  %v483 = vpack.c.b16 %v456, %v455
  %v484 = vpack.c.b16 %v458, %v457
  %v485 = vpack.c.b16 %v460, %v459
  %v486 = vpack.c.b16 %v462, %v461
  %v487 = vpack.c.b16 %v464, %v463
  %v488 = vpack.c.b16 %v466, %v465
  %v489 = vpack.c.b16 %v468, %v467
  %v490 = vpack.c.b16 %v470, %v469
  %v491 = vpack.c.b16 %v472, %v471
  %v492 = vpack.c.b16 %v474, %v473
  %v493 = vpack.c.b16 %v476, %v475
  %v494 = vpack.c.b16 %v478, %v477
  %511 = vmatprep.subr.bf16.mxu0 0
  %512 = vmatpush1.bf16.msra.mxu0 %v486
  %513 = vmatprep.subr.bf16.mxu0 0
  %514 = vmatpush1.bf16.msra.mxu0 %v485
  %515 = vmatprep.subr.bf16.mxu0 0
  %516 = vmatpush1.bf16.msra.mxu0 %v484
  %517 = vmatprep.subr.bf16.mxu0 0
  %518 = vmatpush1.bf16.msra.mxu0 %v483
  %519 = vmatprep.subr.bf16.mxu0 0
  %520 = vmatpush1.bf16.msra.mxu0 %v482
  %521 = vmatprep.subr.bf16.mxu0 0
  %522 = vmatpush1.bf16.msra.mxu0 %v481
  %523 = vmatprep.subr.bf16.mxu0 0
  %524 = vmatpush1.bf16.msra.mxu0 %v480
  %525 = vmatprep.subr.bf16.mxu0 0
  %526 = vmatpush1.bf16.msra.mxu0 %v479
  %527 = vmatprep.subr.bf16.mxu0 0
  %528 = vmatpush2.bf16.msra.mxu0 %v494
  %529 = vmatprep.subr.bf16.mxu0 0
  %530 = vmatpush2.bf16.msra.mxu0 %v493
  %531 = vmatprep.subr.bf16.mxu0 0
  %532 = vmatpush2.bf16.msra.mxu0 %v492
  %533 = vmatprep.subr.bf16.mxu0 0
  %534 = vmatpush2.bf16.msra.mxu0 %v491
  %535 = vmatprep.subr.bf16.mxu0 0
  %536 = vmatpush2.bf16.msra.mxu0 %v490
  %537 = vmatprep.subr.bf16.mxu0 0
  %538 = vmatpush2.bf16.msra.mxu0 %v489
  %539 = vmatprep.subr.bf16.mxu0 0
  %540 = vmatpush2.bf16.msra.mxu0 %v488
  %541 = vmatprep.subr.bf16.mxu0 0
  %542 = vmatpush2.bf16.msra.mxu0 %v487
  %543 = vmatprep.mubr.bf16.mxu0 %v375
  %544 = vmatmul.mubr.bf16.gmra.mxu0 %v374
  %v545 = vpop.f32.mrf.mxu0
  %v546 = vadd.f32 %v413, %v545
  %v547 = vpop.f32.mrf.mxu0
  %v548 = vpop.f32.mrf.mxu0
  %v549 = vadd.f32 %v413, %v548
  %v550 = vpop.f32.mrf.mxu0
  %551 = vdwg.mxu0
  %vm552 = vcmask 64512
  %553 = vst.msk [vmem:[%s7] sm:$0xff] %vm552, %v546
  %554 = vst.msk [vmem:[%s7 + $0x8] sm:$0xff] %vm552, %v549
  // Predicated region
  $region30: #{confidence_function_forward.1} parent=0 // pred_check
    _
  $region31: #{confidence_function_forward.1} parent=0 // pred_check_branch
    %556 = sbr.rel (0) target = $region33
  $region32: #{confidence_function_forward.1} parent=0 // pred_region
    _
  $region33: #{confidence_function_forward.1} parent=0 // pred_fallthru
    _
  // Predicated region
  $region34: #{confidence_function_forward.1} parent=0 // pred_check
    _
  $region35: #{confidence_function_forward.1} parent=0 // pred_check_branch
    %558 = sbr.rel (0) target = $region37
  $region36: #{confidence_function_forward.1} parent=0 // pred_region
    _
  $region37: #{confidence_function_forward.1} parent=0 // pred_fallthru
    _

</llo_original>
